<compile_context>
chip_gen: v6e
topology: v6e:2x2x1
jax: 0.10.0
libtpu: 0.0.40
codegen_flags: <defaults>
</compile_context>

<pallas_src>
import jax
import jax.numpy as jnp
from jax.experimental import pallas as pl
from jax.experimental.pallas import tpu as pltpu

BN_EPS = 1e-5
LANE = 128


def _round_up(n, m):
    return ((n + m - 1) // m) * m


def make_mlp_kernel(num_hidden_layers):
    """Fused MLP kernel: [Linear -> BN(train) -> ReLU] * n -> Linear -> Sigmoid."""

    def kernel(*refs):
        x_ref = refs[0]
        out_ref = refs[-1]
        params = refs[1:-1]

        h = x_ref[...]                       # (batch, in) f32
        idx = 0
        for _ in range(num_hidden_layers):
            w = params[idx][...]             # (in, out)  bf16
            gb = params[idx + 1][...]        # (2, out)   f32: row0=gamma, row1=beta
            idx += 2

            # Linear on the MXU in bf16 with f32 accumulation. The hidden-layer bias
            # is omitted: a per-feature constant added before BatchNorm is exactly
            # cancelled by the batch-mean subtraction (mathematical no-op).
            h = jnp.dot(h.astype(jnp.bfloat16), w,
                        preferred_element_type=jnp.float32)

            # BatchNorm1d (training mode: batch mean, biased variance) folded into a
            # single per-feature scale + shift, then ReLU.
            mean = jnp.mean(h, axis=0, keepdims=True)
            centered = h - mean
            var = jnp.mean(centered * centered, axis=0, keepdims=True)
            scale = jax.lax.rsqrt(var + BN_EPS) * gb[0:1, :]        # (1, out)
            shift = gb[1:2, :] - mean * scale                       # (1, out)
            h = jnp.maximum(h * scale + shift, 0.0)

        # Final Linear (output padded to a lane-dense width) + Sigmoid.
        w = params[idx][...]                 # (in, out_pad) bf16
        b = params[idx + 1][...]             # (1,  out_pad) f32
        h = jnp.dot(h.astype(jnp.bfloat16), w,
                    preferred_element_type=jnp.float32) + b
        # 1/(1+exp(-h)) with the divide on the EUP -> essentially free epilogue.
        out_ref[...] = pl.reciprocal(1.0 + jnp.exp(-h), approx=True)

    return kernel


def init_params(arr, key):
    """PyTorch-default-style init (uniform +-1/sqrt(fan_in)).

    Returns (kernel_params, ref_params):
      kernel_params: per hidden layer [W bf16 (in,out), gb f32 (2,out)],
                     then head [W bf16 (in,out_pad), b f32 (1,out_pad)].
      ref_params:    full-precision f32 params INCLUDING hidden-layer biases,
                     used by the pure-JAX reference to verify that dropping the
                     BN-cancelled hidden biases does not change the forward pass.
    """
    num_hidden = len(arr) - 2
    out_pad = _round_up(arr[-1], LANE * 2)   # 196 -> 256: unmasked lane-dense stores

    kernel_params = []
    ref_params = []
    for i in range(len(arr) - 1):
        in_f, out_f = arr[i], arr[i + 1]
        key, kw, kb = jax.random.split(key, 3)
        bound = 1.0 / float(in_f) ** 0.5
        w = jax.random.uniform(kw, (in_f, out_f), jnp.float32, -bound, bound)
        b = jax.random.uniform(kb, (1, out_f), jnp.float32, -bound, bound)
        if i < num_hidden:
            gamma = jnp.ones((1, out_f), jnp.float32)
            beta = jnp.zeros((1, out_f), jnp.float32)
            ref_params.append((w, b, gamma, beta))
            kernel_params.append(w.astype(jnp.bfloat16))
            kernel_params.append(jnp.concatenate([gamma, beta], axis=0))  # (2, out)
        else:
            ref_params.append((w, b))
            w_pad = jnp.zeros((in_f, out_pad), jnp.float32).at[:, :out_f].set(w)
            b_pad = jnp.zeros((1, out_pad), jnp.float32).at[:, :out_f].set(b)
            kernel_params.append(w_pad.astype(jnp.bfloat16))
            kernel_params.append(b_pad)
    return kernel_params, ref_params


def neural_net_forward(x, kernel_params, arr):
    num_hidden = len(arr) - 2
    batch = x.shape[0]
    out_dim = arr[-1]
    out_pad = _round_up(out_dim, LANE * 2)

    # Whole problem as one VMEM-resident block (BN needs full-batch statistics, so
    # the batch axis must not be tiled without a two-pass stats scheme).
    # TODO(synk): if batch is ever scaled up, add a batch grid (128-row tiles on
    # v5e, 256 on v6e/v7x), restructure BN as a separate stats pass, and set
    # dimension_semantics=("parallel",) + vmem_limit_bytes for v7x's 64 MiB VMEM.
    vmem = pl.BlockSpec(memory_space=pltpu.MemorySpace.VMEM)
    fn = pl.pallas_call(
        make_mlp_kernel(num_hidden),
        out_shape=jax.ShapeDtypeStruct((batch, out_pad), jnp.float32),
        in_specs=[vmem] * (1 + len(kernel_params)),
        out_specs=vmem,
    )
    out_padded = fn(x, *kernel_params)
    return out_padded[:, :out_dim]


def reference_forward(x, ref_params, arr):
    """Pure-JAX f32 reference with the original (unfused, biased) formulation."""
    num_hidden = len(arr) - 2
    h = x
    for i in range(num_hidden):
        w, b, g, beta = ref_params[i]
        h = h @ w + b
        mean = jnp.mean(h, axis=0, keepdims=True)
        var = jnp.mean((h - mean) ** 2, axis=0, keepdims=True)
        h = (h - mean) / jnp.sqrt(var + BN_EPS) * g + beta
        h = jnp.maximum(h, 0.0)
    w, b = ref_params[-1]
    return jax.nn.sigmoid(h @ w + b)


if __name__ == "__main__":
    # Layer-size spec consistent with the module's constructor `arr`; the final
    # width of 196 matches the reshape(-1, 196) used in the original forward.
    arr = [32, 64, 48, 196]
    batch = 8  # multiple of 8 sublanes; BN uses full-batch stats so we do not pad it.

    key = jax.random.PRNGKey(0)
    key, kx, kp = jax.random.split(key, 3)
    x = jax.random.normal(kx, (batch, arr[0]), jnp.float32)
    kernel_params, ref_params = init_params(arr, kp)

    # TODO(synk): the original forward also appends results to a global
    # `visual_track` dict (host-side logging side effect); not representable in
    # a Pallas kernel and intentionally omitted.

    out = jax.block_until_ready(neural_net_forward(x, kernel_params, arr))
    ref = reference_forward(x, ref_params, arr)

    assert out.shape == (batch, arr[-1])
    # bf16 matmuls + approx-reciprocal sigmoid vs. the f32 reference -> loosened tol.
    assert jnp.allclose(out, ref, atol=2e-2, rtol=2e-2), float(jnp.max(jnp.abs(out - ref)))

    print("KERNEL_OK")
</pallas_src>

<mosaic_0001>
module attributes {stable_mosaic.version = 11 : i64} {
  func.func @kernel(%arg0: memref<8x32xf32, #tpu.memory_space<vmem>>, %arg1: memref<32x64xbf16, #tpu.memory_space<vmem>>, %arg2: memref<2x64xf32, #tpu.memory_space<vmem>>, %arg3: memref<64x48xbf16, #tpu.memory_space<vmem>>, %arg4: memref<2x48xf32, #tpu.memory_space<vmem>>, %arg5: memref<48x256xbf16, #tpu.memory_space<vmem>>, %arg6: memref<1x256xf32, #tpu.memory_space<vmem>>, %arg7: memref<8x256xf32, #tpu.memory_space<vmem>>) attributes {dimension_semantics = [], scalar_prefetch = 0 : i64, scratch_operands = 0 : i64, tpu.core_type = #tpu.core_type<tc>} {
    %c0 = arith.constant 0 : index
    %c0_0 = arith.constant 0 : index
    %0 = vector.load %arg0[%c0, %c0_0] : memref<8x32xf32, #tpu.memory_space<vmem>>, vector<8x32xf32>
    %c0_1 = arith.constant 0 : index
    %c0_2 = arith.constant 0 : index
    %1 = vector.load %arg1[%c0_1, %c0_2] : memref<32x64xbf16, #tpu.memory_space<vmem>>, vector<32x64xbf16>
    %c0_3 = arith.constant 0 : index
    %c0_4 = arith.constant 0 : index
    %2 = vector.load %arg2[%c0_3, %c0_4] : memref<2x64xf32, #tpu.memory_space<vmem>>, vector<2x64xf32>
    %3 = arith.truncf %0 : vector<8x32xf32> to vector<8x32xbf16>
    %cst = arith.constant dense<0.000000e+00> : vector<8x64xf32>
    %4 = tpu.matmul %3, %1, %cst {dimension_numbers = #tpu.dot_dimension_numbers<[1], [0], [0], [1], [0, 0, 1, 1], [], []>} : vector<8x32xbf16>, vector<32x64xbf16>, vector<8x64xf32> -> vector<8x64xf32>
    %cst_5 = arith.constant dense<0.000000e+00> : vector<64xf32>
    %5 = vector.multi_reduction <add>, %4, %cst_5 [0] : vector<8x64xf32> to vector<64xf32>
    %6 = vector.shape_cast %5 : vector<64xf32> to vector<1x64xf32>
    %cst_6 = arith.constant 8.000000e+00 : f32
    %7 = vector.broadcast %cst_6 : f32 to vector<1x64xf32>
    %8 = arith.divf %6, %7 : vector<1x64xf32>
    %9 = vector.broadcast %8 : vector<1x64xf32> to vector<8x64xf32>
    %10 = arith.subf %4, %9 : vector<8x64xf32>
    %11 = arith.mulf %10, %10 : vector<8x64xf32>
    %cst_7 = arith.constant dense<0.000000e+00> : vector<64xf32>
    %12 = vector.multi_reduction <add>, %11, %cst_7 [0] : vector<8x64xf32> to vector<64xf32>
    %13 = vector.shape_cast %12 : vector<64xf32> to vector<1x64xf32>
    %cst_8 = arith.constant 8.000000e+00 : f32
    %14 = vector.broadcast %cst_8 : f32 to vector<1x64xf32>
    %15 = arith.divf %13, %14 : vector<1x64xf32>
    %cst_9 = arith.constant 9.99999974E-6 : f32
    %16 = vector.broadcast %cst_9 : f32 to vector<1x64xf32>
    %17 = arith.addf %15, %16 : vector<1x64xf32>
    %18 = math.rsqrt %17 : vector<1x64xf32>
    %19 = vector.extract_strided_slice %2 {offsets = [0, 0], sizes = [1, 64], strides = [1, 1]} : vector<2x64xf32> to vector<1x64xf32>
    %20 = arith.mulf %18, %19 : vector<1x64xf32>
    %21 = vector.extract_strided_slice %2 {offsets = [1, 0], sizes = [1, 64], strides = [1, 1]} : vector<2x64xf32> to vector<1x64xf32>
    %22 = arith.mulf %8, %20 : vector<1x64xf32>
    %23 = arith.subf %21, %22 : vector<1x64xf32>
    %24 = vector.broadcast %20 : vector<1x64xf32> to vector<8x64xf32>
    %25 = arith.mulf %4, %24 : vector<8x64xf32>
    %26 = vector.broadcast %23 : vector<1x64xf32> to vector<8x64xf32>
    %27 = arith.addf %25, %26 : vector<8x64xf32>
    %cst_10 = arith.constant 0.000000e+00 : f32
    %28 = vector.broadcast %cst_10 : f32 to vector<8x64xf32>
    %29 = arith.maximumf %27, %28 : vector<8x64xf32>
    %c0_11 = arith.constant 0 : index
    %c0_12 = arith.constant 0 : index
    %30 = vector.load %arg3[%c0_11, %c0_12] : memref<64x48xbf16, #tpu.memory_space<vmem>>, vector<64x48xbf16>
    %c0_13 = arith.constant 0 : index
    %c0_14 = arith.constant 0 : index
    %31 = vector.load %arg4[%c0_13, %c0_14] : memref<2x48xf32, #tpu.memory_space<vmem>>, vector<2x48xf32>
    %32 = arith.truncf %29 : vector<8x64xf32> to vector<8x64xbf16>
    %cst_15 = arith.constant dense<0.000000e+00> : vector<8x48xf32>
    %33 = tpu.matmul %32, %30, %cst_15 {dimension_numbers = #tpu.dot_dimension_numbers<[1], [0], [0], [1], [0, 0, 1, 1], [], []>} : vector<8x64xbf16>, vector<64x48xbf16>, vector<8x48xf32> -> vector<8x48xf32>
    %cst_16 = arith.constant dense<0.000000e+00> : vector<48xf32>
    %34 = vector.multi_reduction <add>, %33, %cst_16 [0] : vector<8x48xf32> to vector<48xf32>
    %35 = vector.shape_cast %34 : vector<48xf32> to vector<1x48xf32>
    %cst_17 = arith.constant 8.000000e+00 : f32
    %36 = vector.broadcast %cst_17 : f32 to vector<1x48xf32>
    %37 = arith.divf %35, %36 : vector<1x48xf32>
    %38 = vector.broadcast %37 : vector<1x48xf32> to vector<8x48xf32>
    %39 = arith.subf %33, %38 : vector<8x48xf32>
    %40 = arith.mulf %39, %39 : vector<8x48xf32>
    %cst_18 = arith.constant dense<0.000000e+00> : vector<48xf32>
    %41 = vector.multi_reduction <add>, %40, %cst_18 [0] : vector<8x48xf32> to vector<48xf32>
    %42 = vector.shape_cast %41 : vector<48xf32> to vector<1x48xf32>
    %cst_19 = arith.constant 8.000000e+00 : f32
    %43 = vector.broadcast %cst_19 : f32 to vector<1x48xf32>
    %44 = arith.divf %42, %43 : vector<1x48xf32>
    %cst_20 = arith.constant 9.99999974E-6 : f32
    %45 = vector.broadcast %cst_20 : f32 to vector<1x48xf32>
    %46 = arith.addf %44, %45 : vector<1x48xf32>
    %47 = math.rsqrt %46 : vector<1x48xf32>
    %48 = vector.extract_strided_slice %31 {offsets = [0, 0], sizes = [1, 48], strides = [1, 1]} : vector<2x48xf32> to vector<1x48xf32>
    %49 = arith.mulf %47, %48 : vector<1x48xf32>
    %50 = vector.extract_strided_slice %31 {offsets = [1, 0], sizes = [1, 48], strides = [1, 1]} : vector<2x48xf32> to vector<1x48xf32>
    %51 = arith.mulf %37, %49 : vector<1x48xf32>
    %52 = arith.subf %50, %51 : vector<1x48xf32>
    %53 = vector.broadcast %49 : vector<1x48xf32> to vector<8x48xf32>
    %54 = arith.mulf %33, %53 : vector<8x48xf32>
    %55 = vector.broadcast %52 : vector<1x48xf32> to vector<8x48xf32>
    %56 = arith.addf %54, %55 : vector<8x48xf32>
    %cst_21 = arith.constant 0.000000e+00 : f32
    %57 = vector.broadcast %cst_21 : f32 to vector<8x48xf32>
    %58 = arith.maximumf %56, %57 : vector<8x48xf32>
    %c0_22 = arith.constant 0 : index
    %c0_23 = arith.constant 0 : index
    %59 = vector.load %arg5[%c0_22, %c0_23] : memref<48x256xbf16, #tpu.memory_space<vmem>>, vector<48x256xbf16>
    %c0_24 = arith.constant 0 : index
    %c0_25 = arith.constant 0 : index
    %60 = vector.load %arg6[%c0_24, %c0_25] : memref<1x256xf32, #tpu.memory_space<vmem>>, vector<1x256xf32>
    %61 = arith.truncf %58 : vector<8x48xf32> to vector<8x48xbf16>
    %cst_26 = arith.constant dense<0.000000e+00> : vector<8x256xf32>
    %62 = tpu.matmul %61, %59, %cst_26 {dimension_numbers = #tpu.dot_dimension_numbers<[1], [0], [0], [1], [0, 0, 1, 1], [], []>} : vector<8x48xbf16>, vector<48x256xbf16>, vector<8x256xf32> -> vector<8x256xf32>
    %63 = vector.broadcast %60 : vector<1x256xf32> to vector<8x256xf32>
    %64 = arith.addf %62, %63 : vector<8x256xf32>
    %cst_27 = arith.constant 0.000000e+00 : f32
    %65 = vector.broadcast %cst_27 : f32 to vector<8x256xf32>
    %66 = arith.subf %65, %64 : vector<8x256xf32>
    %67 = math.exp %66 : vector<8x256xf32>
    %cst_28 = arith.constant 1.000000e+00 : f32
    %68 = vector.broadcast %cst_28 : f32 to vector<8x256xf32>
    %69 = arith.addf %68, %67 : vector<8x256xf32>
    %70 = tpu.reciprocal %69 {approx = true} : vector<8x256xf32> -> vector<8x256xf32>
    %c0_29 = arith.constant 0 : index
    %c0_30 = arith.constant 0 : index
    %71 = vector.load %arg7[%c0_29, %c0_30] : memref<8x256xf32, #tpu.memory_space<vmem>>, vector<8x256xf32>
    tpu.vector_store %arg7[%c0_29, %c0_30], %70 {strides = array<i32>} : memref<8x256xf32, #tpu.memory_space<vmem>>, vector<8x256xf32>,
    return
  }
}

</mosaic_0001>

<llo_original>
// kernel: tpu_custom_call.1
$region0: #{tpu_custom_call.1}
  #allocation0 [shape = 'u32[]', space=smem, size = 0x4, offset = 0x4, fixed_abs, tag = 'smem constant byte address 0x4 - core index']
  #allocation1 [shape = 'u32[144,128]{1,0:T(1,128)}', space=vmem, size = 0x12000, scoped, tag = 'internal scratch']
  %s0 = inlined_call_operand.hbm [shape: f32[8,32], index: 0, kind: input, shape index: {}]
  %s1 = inlined_call_operand.vmem [shape: bf16[32,64], index: 1, kind: input, shape index: {}]
  %s2 = inlined_call_operand.hbm [shape: f32[2,64], index: 2, kind: input, shape index: {}]
  %s3 = inlined_call_operand.vmem [shape: bf16[64,48], index: 3, kind: input, shape index: {}]
  %s4 = inlined_call_operand.hbm [shape: f32[2,48], index: 4, kind: input, shape index: {}]
  %s5 = inlined_call_operand.vmem [shape: bf16[48,256], index: 5, kind: input, shape index: {}]
  %s6 = inlined_call_operand.vmem [shape: f32[1,256], index: 6, kind: input, shape index: {}]
  %s7 = inlined_call_operand.hbm [shape: f32[8,256], index: 7, kind: output, shape index: {}]
  %s8 = sld [smem:[#allocation0]]
  $region50: #{tpu_custom_call.1} parent=0
    _
  %s10 = ssub.s32 1, %s8
  %s11 = scalar_select 0, %s10, %s8
  $region1: #{tpu_custom_call.1} parent=0
    #allocation2 [shape = 'u8[4096]{0}', space=vmem, size = 0x1000, scoped, tag = 'input window, operand 0, single buffered']
    #allocation3 [shape = 's32[1]{0}', space=sflag, size = 0x4, scoped, tag = 'scoped memory for tpu_custom_call.1']
    #allocation4 [shape = 's32[1]{0}', space=sflag, size = 0x4, scoped, tag = 'scoped memory for tpu_custom_call.1']
    #allocation5 [shape = 'u8[1024]{0}', space=vmem, size = 0x400, scoped, tag = 'input window, operand 2, single buffered']
    #allocation6 [shape = 's32[1]{0}', space=sflag, size = 0x4, scoped, tag = 'scoped memory for tpu_custom_call.1']
    #allocation7 [shape = 'u8[1024]{0}', space=vmem, size = 0x400, scoped, tag = 'input window, operand 4, single buffered']
    #allocation8 [shape = 'u8[8192]{0}', space=vmem, size = 0x2000, scoped, tag = 'output window, operand 0, single buffered']
    %12 = vsyncpa [#allocation3], 0
    %13 = vsyncpa [#allocation6], 0
    %14 = vsyncpa [#allocation4], 0
    // Predicated region
    $region2: #{tpu_custom_call.1} parent=1 // pred_check
      _
    $region3: #{tpu_custom_call.1} parent=1 // pred_check_branch
      %16 = sbr.rel (0) target = $region5
    $region4: #{tpu_custom_call.1} parent=1 // pred_region
      %s18 = ssub.s32 128, 128
      %19 = vsyncadd [#allocation3], %s18
      %s21 = sshll.u32 [#allocation2], 4
      %s22 = int_to_ptr.vmem [resolvable:$true] %s21
      %24 = dma.hbm_to_vmem [thread:$0]  %s0, 128, %s22, [#allocation3]
    $region5: #{tpu_custom_call.1} parent=1 // pred_fallthru
      _
    // Predicated region
    $region6: #{tpu_custom_call.1} parent=1 // pred_check
      _
    $region7: #{tpu_custom_call.1} parent=1 // pred_check_branch
      %26 = sbr.rel (0) target = $region9
    $region8: #{tpu_custom_call.1} parent=1 // pred_region
      _
    $region9: #{tpu_custom_call.1} parent=1 // pred_fallthru
      _
    // Predicated region
    $region10: #{tpu_custom_call.1} parent=1 // pred_check
      _
    $region11: #{tpu_custom_call.1} parent=1 // pred_check_branch
      %28 = sbr.rel (0) target = $region13
    $region12: #{tpu_custom_call.1} parent=1 // pred_region
      %s30 = ssub.s32 32, 32
      %31 = vsyncadd [#allocation6], %s30
      %s33 = sshll.u32 [#allocation5], 4
      %s34 = int_to_ptr.vmem [resolvable:$true] %s33
      %36 = dma.hbm_to_vmem [thread:$0]  %s2, 32, %s34, [#allocation6]
    $region13: #{tpu_custom_call.1} parent=1 // pred_fallthru
      _
    // Predicated region
    $region14: #{tpu_custom_call.1} parent=1 // pred_check
      _
    $region15: #{tpu_custom_call.1} parent=1 // pred_check_branch
      %38 = sbr.rel (0) target = $region17
    $region16: #{tpu_custom_call.1} parent=1 // pred_region
      _
    $region17: #{tpu_custom_call.1} parent=1 // pred_fallthru
      _
    // Predicated region
    $region18: #{tpu_custom_call.1} parent=1 // pred_check
      _
    $region19: #{tpu_custom_call.1} parent=1 // pred_check_branch
      %40 = sbr.rel (0) target = $region21
    $region20: #{tpu_custom_call.1} parent=1 // pred_region
      %s42 = ssub.s32 32, 32
      %43 = vsyncadd [#allocation6], %s42
      %s45 = sshll.u32 [#allocation7], 4
      %s46 = int_to_ptr.vmem [resolvable:$true] %s45
      %48 = dma.hbm_to_vmem [thread:$0]  %s4, 32, %s46, [#allocation6]
    $region21: #{tpu_custom_call.1} parent=1 // pred_fallthru
      _
    // Predicated region
    $region22: #{tpu_custom_call.1} parent=1 // pred_check
      _
    $region23: #{tpu_custom_call.1} parent=1 // pred_check_branch
      %50 = sbr.rel (0) target = $region25
    $region24: #{tpu_custom_call.1} parent=1 // pred_region
      _
    $region25: #{tpu_custom_call.1} parent=1 // pred_fallthru
      _
    // Predicated region
    $region26: #{tpu_custom_call.1} parent=1 // pred_check
      _
    $region27: #{tpu_custom_call.1} parent=1 // pred_check_branch
      %52 = sbr.rel (0) target = $region29
    $region28: #{tpu_custom_call.1} parent=1 // pred_region
      _
    $region29: #{tpu_custom_call.1} parent=1 // pred_fallthru
      _
    // Predicated region
    $region30: #{tpu_custom_call.1} parent=1 // pred_check
      _
    $region31: #{tpu_custom_call.1} parent=1 // pred_check_branch
      %54 = sbr.rel (0) target = $region33
    $region32: #{tpu_custom_call.1} parent=1 // pred_region
      %55 = dma.done [#allocation3], 128
    $region33: #{tpu_custom_call.1} parent=1 // pred_fallthru
      _
    // Predicated region
    $region34: #{tpu_custom_call.1} parent=1 // pred_check
      _
    $region35: #{tpu_custom_call.1} parent=1 // pred_check_branch
      %57 = sbr.rel (0) target = $region37
    $region36: #{tpu_custom_call.1} parent=1 // pred_region
      %58 = dma.done [#allocation6], 32
    $region37: #{tpu_custom_call.1} parent=1 // pred_fallthru
      _
    // Predicated region
    $region38: #{tpu_custom_call.1} parent=1 // pred_check
      _
    $region39: #{tpu_custom_call.1} parent=1 // pred_check_branch
      %60 = sbr.rel (0) target = $region41
    $region40: #{tpu_custom_call.1} parent=1 // pred_region
      %61 = dma.done [#allocation6], 32
    $region41: #{tpu_custom_call.1} parent=1 // pred_fallthru
      _
    %v63 = vld [vmem:[#allocation2] sm:$0xff]
    %v64 = vld [vmem:[%s1] sm:$0xf]
    %v65 = vld [vmem:[%s1 + $0x4] sm:$0xf]
    %v66 = vld [vmem:[%s1 + $0x8] sm:$0xf]
    %v67 = vld [vmem:[%s1 + $0xc] sm:$0xf]
    %v68 = vld [vmem:[#allocation5] sm:$0x3]
    %v69 = vpack.c.bf16 %v63, %v63
    %v74 = vunpack.c.l.b16 %v64
    %v75 = vunpack.c.l.b16 %v65
    %v76 = vunpack.c.l.b16 %v66
    %v77 = vunpack.c.l.b16 %v67
    %v78 = vpack.c.b16 %v75, %v74
    %v79 = vpack.c.b16 %v77, %v76
    %vm82 = vcmask 261120
    %v84 = vsel %vm82, %v69, 0
    %86 = vmatprep.subr.bf16.mxu0 0
    %87 = vmatpush1.bf16.msra.mxu0 0
    %88 = vmatprep.subr.bf16.mxu0 0
    %89 = vmatpush1.bf16.msra.mxu0 0
    %90 = vmatprep.subr.bf16.mxu0 0
    %91 = vmatpush1.bf16.msra.mxu0 0
    %92 = vmatprep.subr.bf16.mxu0 0
    %93 = vmatpush1.bf16.msra.mxu0 0
    %94 = vmatprep.subr.bf16.mxu0 0
    %95 = vmatpush1.bf16.msra.mxu0 0
    %96 = vmatprep.subr.bf16.mxu0 0
    %97 = vmatpush1.bf16.msra.mxu0 0
    %98 = vmatprep.subr.bf16.mxu0 0
    %99 = vmatpush1.bf16.msra.mxu0 %v79
    %100 = vmatprep.subr.bf16.mxu0 0
    %101 = vmatpush1.bf16.msra.mxu0 %v78
    %102 = vmatprep.subr.bf16.mxu0 0
    %103 = vmatpush2.bf16.msra.mxu0 0
    %104 = vmatprep.subr.bf16.mxu0 0
    %105 = vmatpush2.bf16.msra.mxu0 0
    %106 = vmatprep.subr.bf16.mxu0 0
    %107 = vmatpush2.bf16.msra.mxu0 0
    %108 = vmatprep.subr.bf16.mxu0 0
    %109 = vmatpush2.bf16.msra.mxu0 0
    %110 = vmatprep.subr.bf16.mxu0 0
    %111 = vmatpush2.bf16.msra.mxu0 0
    %112 = vmatprep.subr.bf16.mxu0 0
    %113 = vmatpush2.bf16.msra.mxu0 0
    %114 = vmatprep.subr.bf16.mxu0 0
    %115 = vmatpush2.bf16.msra.mxu0 0
    %116 = vmatprep.subr.bf16.mxu0 0
    %117 = vmatpush2.bf16.msra.mxu0 0
    %118 = vmatprep.mubr.bf16.mxu0 0
    %119 = vmatmul.mubr.bf16.gmra.mxu0 %v84
    %v120 = vpop.f32.mrf.mxu0
    %v121 = vadd.f32 0.0, %v120
    %v122 = vpop.f32.mrf.mxu0
    %v123 = vpop.f32.mrf.mxu0
    %v124 = vpop.f32.mrf.mxu0
    %125 = vdwg.mxu0
    %vm126 = vcmask 523264
    %v127 = vsel %vm126, %v121, 0.0
    %v128 = vrot.slane %v127, 4
    %v129 = vadd.f32 %v127, %v128
    %v130 = vrot.slane %v129, 2
    %v131 = vadd.f32 %v129, %v130
    %v132 = vrot.slane %v131, 1
    %v133 = vadd.f32 %v131, %v132
    %v134 = vrcp.pop 8.0
    %v135 = vmul.f32 %v133, %v134
    %v136 = vsub.f32 %v121, %v135
    %v137 = vmul.f32 %v136, %v136
    %v138 = vsel %vm126, %v137, 0.0
    %v139 = vrot.slane %v138, 4
    %v140 = vadd.f32 %v138, %v139
    %v141 = vrot.slane %v140, 2
    %v142 = vadd.f32 %v140, %v141
    %v143 = vrot.slane %v142, 1
    %v144 = vadd.f32 %v142, %v143
    %v145 = vmul.f32 %v144, %v134
    %v146 = vadd.f32 %v145, 1e-05
    %v147 = vrsqrt.pop %v146
    %v148 = vmul.f32 %v147, %v68
    %v149 = vmul.f32 %v135, %v148
    %v151 = vrot.slane %v149, 7
    %v153 = vsub.f32 %v68, %v151
    %v154 = vlaneseq
    %v155 = vshrl.u32 %v154, 7
    %v156 = vsub.s32 0, %v155
    %v157 = vrot.slane %v148, %v156
    %v158 = vmul.f32 %v121, %v157
    %v159 = vlaneseq
    %v160 = vshrl.u32 %v159, 7
    %v161 = vsub.s32 1, %v160
    %v162 = vrot.slane %v153, %v161
    %v163 = vadd.f32 %v158, %v162
    %v164 = vmax.f32 %v163, 0.0
    %v165 = vld [vmem:[%s3] sm:$0xf]
    %v166 = vld [vmem:[%s3 + $0x4] sm:$0xf]
    %v167 = vld [vmem:[%s3 + $0x8] sm:$0xf]
    %v168 = vld [vmem:[%s3 + $0xc] sm:$0xf]
    %v169 = vld [vmem:[%s3 + $0x10] sm:$0xf]
    %v170 = vld [vmem:[%s3 + $0x14] sm:$0xf]
    %v171 = vld [vmem:[%s3 + $0x18] sm:$0xf]
    %v172 = vld [vmem:[%s3 + $0x1c] sm:$0xf]
    %v173 = vld [vmem:[#allocation7] sm:$0x3]
    %v174 = vpack.c.bf16 %v164, %v164
    %v183 = vunpack.c.l.b16 %v165
    %v184 = vunpack.c.l.b16 %v166
    %v185 = vunpack.c.l.b16 %v167
    %v186 = vunpack.c.l.b16 %v168
    %v187 = vunpack.c.l.b16 %v169
    %v188 = vunpack.c.l.b16 %v170
    %v189 = vunpack.c.l.b16 %v171
    %v190 = vunpack.c.l.b16 %v172
    %v191 = vpack.c.b16 %v184, %v183
    %v192 = vpack.c.b16 %v186, %v185
    %v193 = vpack.c.b16 %v188, %v187
    %v194 = vpack.c.b16 %v190, %v189
    %v200 = vsel %vm126, %v174, 0
    %202 = vmatprep.subr.bf16.mxu0 0
    %203 = vmatpush1.bf16.msra.mxu0 0
    %204 = vmatprep.subr.bf16.mxu0 0
    %205 = vmatpush1.bf16.msra.mxu0 0
    %206 = vmatprep.subr.bf16.mxu0 0
    %207 = vmatpush1.bf16.msra.mxu0 0
    %208 = vmatprep.subr.bf16.mxu0 0
    %209 = vmatpush1.bf16.msra.mxu0 0
    %210 = vmatprep.subr.bf16.mxu0 0
    %211 = vmatpush1.bf16.msra.mxu0 %v194
    %212 = vmatprep.subr.bf16.mxu0 0
    %213 = vmatpush1.bf16.msra.mxu0 %v193
    %214 = vmatprep.subr.bf16.mxu0 0
    %215 = vmatpush1.bf16.msra.mxu0 %v192
    %216 = vmatprep.subr.bf16.mxu0 0
    %217 = vmatpush1.bf16.msra.mxu0 %v191
    %218 = vmatprep.subr.bf16.mxu0 0
    %219 = vmatpush2.bf16.msra.mxu0 0
    %220 = vmatprep.subr.bf16.mxu0 0
    %221 = vmatpush2.bf16.msra.mxu0 0
    %222 = vmatprep.subr.bf16.mxu0 0
    %223 = vmatpush2.bf16.msra.mxu0 0
    %224 = vmatprep.subr.bf16.mxu0 0
    %225 = vmatpush2.bf16.msra.mxu0 0
    %226 = vmatprep.subr.bf16.mxu0 0
    %227 = vmatpush2.bf16.msra.mxu0 0
    %228 = vmatprep.subr.bf16.mxu0 0
    %229 = vmatpush2.bf16.msra.mxu0 0
    %230 = vmatprep.subr.bf16.mxu0 0
    %231 = vmatpush2.bf16.msra.mxu0 0
    %232 = vmatprep.subr.bf16.mxu0 0
    %233 = vmatpush2.bf16.msra.mxu0 0
    %234 = vmatprep.mubr.bf16.mxu0 0
    %235 = vmatmul.mubr.bf16.gmra.mxu0 %v200
    %v236 = vpop.f32.mrf.mxu0
    %v237 = vadd.f32 0.0, %v236
    %v238 = vpop.f32.mrf.mxu0
    %v239 = vpop.f32.mrf.mxu0
    %v240 = vpop.f32.mrf.mxu0
    %241 = vdwg.mxu0
    %vm242 = vcmask 392192
    %v243 = vsel %vm242, %v237, 0.0
    %v244 = vrot.slane %v243, 4
    %v245 = vadd.f32 %v243, %v244
    %v246 = vrot.slane %v245, 2
    %v247 = vadd.f32 %v245, %v246
    %v248 = vrot.slane %v247, 1
    %v249 = vadd.f32 %v247, %v248
    %v250 = vmul.f32 %v249, %v134
    %v251 = vsub.f32 %v237, %v250
    %v252 = vmul.f32 %v251, %v251
    %v253 = vsel %vm242, %v252, 0.0
    %v254 = vrot.slane %v253, 4
    %v255 = vadd.f32 %v253, %v254
    %v256 = vrot.slane %v255, 2
    %v257 = vadd.f32 %v255, %v256
    %v258 = vrot.slane %v257, 1
    %v259 = vadd.f32 %v257, %v258
    %v260 = vmul.f32 %v259, %v134
    %v261 = vadd.f32 %v260, 1e-05
    %v262 = vrsqrt.pop %v261
    %v263 = vmul.f32 %v262, %v173
    %v264 = vmul.f32 %v250, %v263
    %v266 = vrot.slane %v264, 7
    %v268 = vsub.f32 %v173, %v266
    %v269 = vlaneseq
    %v270 = vshrl.u32 %v269, 7
    %v271 = vsub.s32 0, %v270
    %v272 = vrot.slane %v263, %v271
    %v273 = vmul.f32 %v237, %v272
    %v274 = vlaneseq
    %v275 = vshrl.u32 %v274, 7
    %v276 = vsub.s32 1, %v275
    %v277 = vrot.slane %v268, %v276
    %v278 = vadd.f32 %v273, %v277
    %v279 = vmax.f32 %v278, 0.0
    %v280 = vld [vmem:[%s5] sm:$0xff]
    %v281 = vld [vmem:[%s5 + $0x8] sm:$0xff]
    %v282 = vld [vmem:[%s5 + $0x10] sm:$0xff]
    %v283 = vld [vmem:[%s5 + $0x18] sm:$0xff]
    %v284 = vld [vmem:[%s5 + $0x20] sm:$0xff]
    %v285 = vld [vmem:[%s5 + $0x28] sm:$0xff]
    %v286 = vld [vmem:[%s6] sm:$0x3]
    %v287 = vpack.c.bf16 %v279, %v279
    %v289 = vlaneseq
    %v290 = vshrl.u32 %v289, 7
    %v291 = vsub.s32 0, %v290
    %v292 = vrot.slane %v286, %v291
    %v293 = vlaneseq
    %v294 = vshrl.u32 %v293, 7
    %v295 = vsub.s32 1, %v294
    %v296 = vrot.slane %v286, %v295
    %v305 = vunpack.c.l.b16 %v280
    %v306 = vunpack.c.h.b16 %v280
    %v307 = vunpack.c.l.b16 %v281
    %v308 = vunpack.c.h.b16 %v281
    %v309 = vunpack.c.l.b16 %v282
    %v310 = vunpack.c.h.b16 %v282
    %v311 = vunpack.c.l.b16 %v283
    %v312 = vunpack.c.h.b16 %v283
    %v313 = vunpack.c.l.b16 %v284
    %v314 = vunpack.c.h.b16 %v284
    %v315 = vunpack.c.l.b16 %v285
    %v316 = vunpack.c.h.b16 %v285
    %v317 = vpack.c.b16 %v307, %v305
    %v318 = vpack.c.b16 %v308, %v306
    %v319 = vpack.c.b16 %v311, %v309
    %v320 = vpack.c.b16 %v312, %v310
    %v321 = vpack.c.b16 %v315, %v313
    %v322 = vpack.c.b16 %v316, %v314
    %v330 = vsel %vm242, %v287, 0
    %332 = vmatprep.subr.bf16.mxu0 0
    %333 = vmatpush1.bf16.msra.mxu0 0
    %334 = vmatprep.subr.bf16.mxu0 0
    %335 = vmatpush1.bf16.msra.mxu0 0
    %336 = vmatprep.subr.bf16.mxu0 0
    %337 = vmatpush1.bf16.msra.mxu0 0
    %338 = vmatprep.subr.bf16.mxu0 0
    %339 = vmatpush1.bf16.msra.mxu0 0
    %340 = vmatprep.subr.bf16.mxu0 0
    %341 = vmatpush1.bf16.msra.mxu0 0
    %342 = vmatprep.subr.bf16.mxu0 %v322
    %343 = vmatpush1.bf16.msra.mxu0 %v321
    %344 = vmatprep.subr.bf16.mxu0 %v320
    %345 = vmatpush1.bf16.msra.mxu0 %v319
    %346 = vmatprep.subr.bf16.mxu0 %v318
    %347 = vmatpush1.bf16.msra.mxu0 %v317
    %348 = vmatprep.subr.bf16.mxu0 0
    %349 = vmatpush2.bf16.msra.mxu0 0
    %350 = vmatprep.subr.bf16.mxu0 0
    %351 = vmatpush2.bf16.msra.mxu0 0
    %352 = vmatprep.subr.bf16.mxu0 0
    %353 = vmatpush2.bf16.msra.mxu0 0
    %354 = vmatprep.subr.bf16.mxu0 0
    %355 = vmatpush2.bf16.msra.mxu0 0
    %356 = vmatprep.subr.bf16.mxu0 0
    %357 = vmatpush2.bf16.msra.mxu0 0
    %358 = vmatprep.subr.bf16.mxu0 0
    %359 = vmatpush2.bf16.msra.mxu0 0
    %360 = vmatprep.subr.bf16.mxu0 0
    %361 = vmatpush2.bf16.msra.mxu0 0
    %362 = vmatprep.subr.bf16.mxu0 0
    %363 = vmatpush2.bf16.msra.mxu0 0
    %364 = vmatprep.mubr.bf16.mxu0 0
    %365 = vmatmul.mubr.bf16.gmra.mxu0 %v330
    %v366 = vpop.f32.mrf.mxu0
    %v367 = vadd.f32 %v292, %v366
    %v368 = vpop.f32.mrf.mxu0
    %v369 = vadd.f32 %v296, %v368
    %v370 = vpop.f32.mrf.mxu0
    %v371 = vpop.f32.mrf.mxu0
    %372 = vdwg.mxu0
    %v373 = vsub.f32 0.0, %v367
    %v374 = vsub.f32 0.0, %v369
    %v375 = vmul.f32 %v373, 1.442695
    %v376 = vpow.pop %v375
    %v377 = vmul.f32 %v374, 1.442695
    %v378 = vpow.pop %v377
    %v379 = vadd.f32 %v376, 1.0
    %v380 = vadd.f32 %v378, 1.0
    %v381 = vrcp.pop %v379
    %v382 = vrcp.pop %v380
    %383 = vst [vmem:[#allocation8] sm:$0xff] %v381
    %384 = vst [vmem:[#allocation8 + $0x8] sm:$0xff] %v382
    // Predicated region
    $region42: #{tpu_custom_call.1} parent=1 // pred_check
      _
    $region43: #{tpu_custom_call.1} parent=1 // pred_check_branch
      %386 = sbr.rel (0) target = $region45
    $region44: #{tpu_custom_call.1} parent=1 // pred_region
      %s388 = ssub.s32 256, 256
      %389 = vsyncadd [#allocation4], %s388
      %s391 = sshll.u32 [#allocation8], 4
      %s392 = int_to_ptr.vmem [resolvable:$true] %s391
      %394 = dma.vmem_to_hbm [thread:$0]  %s392, 256, %s7, [#allocation4]
    $region45: #{tpu_custom_call.1} parent=1 // pred_fallthru
      _
    // Predicated region
    $region46: #{tpu_custom_call.1} parent=1 // pred_check
      _
    $region47: #{tpu_custom_call.1} parent=1 // pred_check_branch
      %396 = sbr.rel (0) target = $region49
    $region48: #{tpu_custom_call.1} parent=1 // pred_region
      %397 = dma.done [#allocation4], 256
    $region49: #{tpu_custom_call.1} parent=1 // pred_fallthru
      _
    %398 = vsyncpa [#allocation3], 1
    %399 = vsyncpa [#allocation6], 1
    %400 = vsyncpa [#allocation4], 1

</llo_original>
